<compile_context>
chip_gen: v7x
topology: tpu7x:2x2x1
jax: 0.10.0
libtpu: 0.0.40
codegen_flags: <defaults>
</compile_context>

<pallas_src>
import jax
import jax.numpy as jnp
import numpy as np
from jax.experimental import pallas as pl
from jax.experimental.pallas import tpu as pltpu

_LANE = 128


def transition_kernel(x_ref, w_ref, b_ref, o_ref):
    # x_ref : (1, Cin, TP) bf16  -- relu(bn(x)) already 2x2-window-summed;
    #                               channels in sublanes, pooled pixels in lanes.
    # w_ref : (Cout, Cin)  bf16  -- conv1x1 weight with the 0.25 avg factor folded in.
    # b_ref : (Cout, 1)    f32   -- conv bias (lane-broadcast).
    # o_ref : (1, Cout, TP) f32  -- lane-dense output stores.
    pooled = x_ref[0]                                           # (Cin, TP) bf16
    out = jnp.dot(w_ref[...], pooled,
                  preferred_element_type=jnp.float32)           # MXU, f32 accumulate
    o_ref[0] = (out + b_ref[...]).astype(o_ref.dtype)           # (Cout, TP)


def transition_forward(x_nchw, gamma, beta, run_mean, run_var, conv_w, conv_b,
                       eps=1e-5, tile_p=1024):
    """x_nchw: (N, Cin, H, W) float32.  Returns (N, Cout, H//2, W//2) float32."""
    N, Cin, H, W = x_nchw.shape
    Cout = conv_w.shape[0]
    assert H % 2 == 0 and W % 2 == 0, "2x2/stride-2 pooling assumes even H, W"
    Hp, Wp = H // 2, W // 2
    P = Hp * Wp                                                  # pooled pixels/image

    # --- pixel tile selection: always lane-aligned, P padded to a whole tile ---
    tile_p = max(_LANE, (tile_p // _LANE) * _LANE)               # force multiple of 128
    if P < tile_p:
        tile_p = ((P + _LANE - 1) // _LANE) * _LANE              # one full-width tile
    P_pad = ((P + tile_p - 1) // tile_p) * tile_p
    num_tiles = P_pad // tile_p

    # --- fold BN running stats into per-channel scale/shift (f32) ---
    inv_std = 1.0 / jnp.sqrt(run_var.astype(jnp.float32) + eps)
    scale = (gamma.astype(jnp.float32) * inv_std)
    shift = (beta.astype(jnp.float32) - run_mean.astype(jnp.float32) * scale)

    # --- conv weight (Cout,Cin,1,1) -> (Cout,Cin), fold the 2x2-average 0.25 (exact) ---
    w_mat = (conv_w.reshape(Cout, Cin).astype(jnp.float32) * 0.25).astype(jnp.bfloat16)
    b_col = conv_b.reshape(Cout, 1).astype(jnp.float32)

    # --- single fused XLA pass over x: BN + ReLU + 2x2 window-sum + bf16 cast + pad ---
    # NCHW window-sum is a contiguous reshape+reduce (no transpose pass); the
    # intermediate written to / re-read from HBM is (N, Cin, P_pad) in bf16.
    xf = x_nchw.astype(jnp.float32)
    y = jnp.maximum(xf * scale[None, :, None, None] + shift[None, :, None, None], 0.0)
    pooled = y.reshape(N, Cin, Hp, 2, Wp, 2).sum(axis=(3, 5))    # (N, Cin, Hp, Wp) f32
    pooled = pooled.reshape(N, Cin, P).astype(jnp.bfloat16)
    if P_pad > P:
        pooled = jnp.pad(pooled, ((0, 0), (0, 0), (0, P_pad - P)))

    grid = (N, num_tiles)

    out_flat = pl.pallas_call(
        transition_kernel,
        out_shape=jax.ShapeDtypeStruct((N, Cout, P_pad), jnp.float32),
        grid_spec=pltpu.PrefetchScalarGridSpec(
            num_scalar_prefetch=0,
            grid=grid,
            in_specs=[
                pl.BlockSpec((1, Cin, tile_p), lambda n, j: (n, 0, j)),
                # Weight/bias are grid-invariant; in bf16 the double-buffer
                # duplication is <1 MiB so explicit single-buffering is skipped.
                pl.BlockSpec((Cout, Cin), lambda n, j: (0, 0)),
                pl.BlockSpec((Cout, 1), lambda n, j: (0, 0)),
            ],
            out_specs=pl.BlockSpec((1, Cout, tile_p), lambda n, j: (n, 0, j)),
        ),
        compiler_params=pltpu.CompilerParams(
            dimension_semantics=("parallel", "parallel"),
            vmem_limit_bytes=56 << 20,   # above scoped default, under v7x's 64 MiB/TC
        ),
    )(pooled, w_mat, b_col)

    # Drop the pixel padding and restore NCHW: contiguous slice + reshape.
    return out_flat[:, :, :P].reshape(N, Cout, Hp, Wp)


def transition_reference(x_nchw, gamma, beta, run_mean, run_var, conv_w, conv_b,
                         eps=1e-5):
    """Pure-JAX reference in the exact PyTorch op order (bn -> relu -> conv -> pool)."""
    N, Cin, H, W = x_nchw.shape
    Cout = conv_w.shape[0]
    inv_std = 1.0 / jnp.sqrt(run_var + eps)
    xb = (x_nchw - run_mean[None, :, None, None]) * inv_std[None, :, None, None]
    xb = xb * gamma[None, :, None, None] + beta[None, :, None, None]
    xr = jnp.maximum(xb, 0.0)
    w = conv_w.reshape(Cout, Cin)
    y = jnp.einsum("nchw,oc->nohw", xr, w) + conv_b[None, :, None, None]
    Hp, Wp = H // 2, W // 2
    y = y.reshape(N, Cout, Hp, 2, Wp, 2).mean(axis=(3, 5))
    return y


if __name__ == "__main__":
    # Small deterministic config: Transition(in_planes=8, out_planes=4, inp_size=16)
    N, Cin, Cout, H, W = 2, 8, 4, 16, 16

    key = jax.random.PRNGKey(0)
    k_x, k_g, k_b, k_m, k_v, k_w, k_bias = jax.random.split(key, 7)

    x = jax.random.normal(k_x, (N, Cin, H, W), dtype=jnp.float32)

    # BatchNorm2d(in_planes) params / running stats (inference mode)
    gamma = 1.0 + 0.1 * jax.random.normal(k_g, (Cin,), dtype=jnp.float32)
    beta = 0.1 * jax.random.normal(k_b, (Cin,), dtype=jnp.float32)
    run_mean = 0.1 * jax.random.normal(k_m, (Cin,), dtype=jnp.float32)
    run_var = jnp.abs(1.0 + 0.1 * jax.random.normal(k_v, (Cin,), dtype=jnp.float32))

    # wrapped_conv(..., kernel_size=1, stride=1) weight/bias
    conv_w = 0.1 * jax.random.normal(k_w, (Cout, Cin, 1, 1), dtype=jnp.float32)
    conv_b = 0.01 * jax.random.normal(k_bias, (Cout,), dtype=jnp.float32)

    out = transition_forward(x, gamma, beta, run_mean, run_var, conv_w, conv_b)
    out = jax.block_until_ready(out)

    ref = transition_reference(x, gamma, beta, run_mean, run_var, conv_w, conv_b)
    # bf16 storage of the streamed activation/weight -> loosened tolerance.
    np.testing.assert_allclose(np.asarray(out), np.asarray(ref), atol=2e-2, rtol=2e-2)
    assert out.shape == (N, Cout, H // 2, W // 2)

    print("KERNEL_OK")
</pallas_src>

<mosaic_0001>
module attributes {stable_mosaic.version = 11 : i64} {
  func.func @transition_kernel(%arg0: i32, %arg1: i32, %arg2: memref<1x8x128xbf16, #tpu.memory_space<vmem>>, %arg3: memref<4x8xbf16, #tpu.memory_space<vmem>>, %arg4: memref<4x1xf32, #tpu.memory_space<vmem>>, %arg5: memref<1x4x128xf32, #tpu.memory_space<vmem>>) attributes {dimension_semantics = [#tpu.dimension_semantics<parallel>, #tpu.dimension_semantics<parallel>], iteration_bounds = array<i64: 2, 1>, scalar_prefetch = 0 : i64, scratch_operands = 0 : i64, tpu.core_type = #tpu.core_type<tc>, window_params = [{transform_indices = @transform_0, window_bounds = array<i64: 1, 8, 128>}, {pipeline_mode = #tpu.pipeline_mode<synchronous>, transform_indices = @transform_1, window_bounds = array<i64: 4, 8>}, {pipeline_mode = #tpu.pipeline_mode<synchronous>, transform_indices = @transform_2, window_bounds = array<i64: 4, 1>}, {transform_indices = @transform_3, window_bounds = array<i64: 1, 4, 128>}]} {
    %c0 = arith.constant 0 : index
    %c0_0 = arith.constant 0 : index
    %c0_1 = arith.constant 0 : index
    %0 = vector.load %arg2[%c0, %c0_0, %c0_1] : memref<1x8x128xbf16, #tpu.memory_space<vmem>>, vector<1x8x128xbf16>
    %1 = vector.shape_cast %0 : vector<1x8x128xbf16> to vector<8x128xbf16>
    %c0_2 = arith.constant 0 : index
    %c0_3 = arith.constant 0 : index
    %2 = vector.load %arg3[%c0_2, %c0_3] : memref<4x8xbf16, #tpu.memory_space<vmem>>, vector<4x8xbf16>
    %cst = arith.constant dense<0.000000e+00> : vector<4x128xf32>
    %3 = tpu.matmul %2, %1, %cst {dimension_numbers = #tpu.dot_dimension_numbers<[1], [0], [0], [1], [0, 0, 1, 1], [], []>} : vector<4x8xbf16>, vector<8x128xbf16>, vector<4x128xf32> -> vector<4x128xf32>
    %c0_4 = arith.constant 0 : index
    %c0_5 = arith.constant 0 : index
    %4 = vector.load %arg4[%c0_4, %c0_5] : memref<4x1xf32, #tpu.memory_space<vmem>>, vector<4x1xf32>
    %5 = vector.broadcast %4 : vector<4x1xf32> to vector<4x128xf32>
    %6 = arith.addf %3, %5 : vector<4x128xf32>
    %c0_6 = arith.constant 0 : index
    %c0_7 = arith.constant 0 : index
    %c0_8 = arith.constant 0 : index
    %7 = vector.load %arg5[%c0_6, %c0_7, %c0_8] : memref<1x4x128xf32, #tpu.memory_space<vmem>>, vector<1x4x128xf32>
    %8 = vector.shape_cast %7 : vector<1x4x128xf32> to vector<4x128xf32>
    %9 = vector.shape_cast %6 : vector<4x128xf32> to vector<1x4x128xf32>
    tpu.vector_store %arg5[%c0_6, %c0_7, %c0_8], %9 {strides = array<i32>} : memref<1x4x128xf32, #tpu.memory_space<vmem>>, vector<1x4x128xf32>,
    return
  }
  func.func @transform_0(%arg0: i32, %arg1: i32) -> (i32, i32, i32) {
    %c0_i32 = arith.constant 0 : i32
    %c0_i32_0 = arith.constant 0 : i32
    return %arg0, %c0_i32, %arg1 : i32, i32, i32
  }
  func.func @transform_1(%arg0: i32, %arg1: i32) -> (i32, i32) {
    %c0_i32 = arith.constant 0 : i32
    %c0_i32_0 = arith.constant 0 : i32
    %c0_i32_1 = arith.constant 0 : i32
    return %c0_i32, %c0_i32_0 : i32, i32
  }
  func.func @transform_2(%arg0: i32, %arg1: i32) -> (i32, i32) {
    %c0_i32 = arith.constant 0 : i32
    %c0_i32_0 = arith.constant 0 : i32
    %c0_i32_1 = arith.constant 0 : i32
    return %c0_i32, %c0_i32_0 : i32, i32
  }
  func.func @transform_3(%arg0: i32, %arg1: i32) -> (i32, i32, i32) {
    %c0_i32 = arith.constant 0 : i32
    %c0_i32_0 = arith.constant 0 : i32
    return %arg0, %c0_i32, %arg1 : i32, i32, i32
  }
}

</mosaic_0001>

<llo_original>
// kernel: tpu_custom_call.1
$region0: #{tpu_custom_call.1}
  #allocation0 [shape = 'u32[]', space=smem, size = 0x4, offset = 0x4, fixed_abs, tag = 'smem constant byte address 0x4 - core index']
  #allocation1 [shape = 'u32[144,128]{1,0:T(1,128)}', space=vmem, size = 0x12000, scoped, tag = 'internal scratch']
  %s0 = inlined_call_operand.hbm [shape: bf16[2,8,128], index: 0, kind: input, shape index: {}]
  %s1 = inlined_call_operand.vmem [shape: bf16[4,8], index: 1, kind: input, shape index: {}]
  %s2 = inlined_call_operand.vmem [shape: f32[4,1], index: 2, kind: input, shape index: {}]
  %s3 = inlined_call_operand.hbm [shape: f32[2,4,128], index: 3, kind: output, shape index: {}]
  %s4 = sld [smem:[#allocation0]]
  $region49: #{tpu_custom_call.1} parent=0
    _
  %s6 = ssub.s32 1, %s4
  %s7 = scalar_select 0, %s6, %s4
  $region1: #{tpu_custom_call.1} parent=0
    #allocation2 [shape = 'u8[4096]{0}', space=vmem, size = 0x1000, scoped, tag = 'input window, operand 0']
    #allocation3 [shape = 's32[2]{0}', space=sflag, size = 0x8, scoped, tag = 'scoped memory for tpu_custom_call.1']
    #allocation4 [shape = 's32[2]{0}', space=sflag, size = 0x8, scoped, tag = 'scoped memory for tpu_custom_call.1']
    #allocation5 [shape = 'u8[4096]{0}', space=vmem, size = 0x1000, scoped, tag = 'output window, operand 0']
    %8 = vsyncpa [#allocation3], 0
    %s9 = scalar_lea.sflag [#allocation3], 1
    %10 = vsyncpa %s9, 0
    %11 = vsyncpa [#allocation4], 0
    %s12 = scalar_lea.sflag [#allocation4], 1
    %13 = vsyncpa %s12, 0
    loop: start=0, step=1, limit=4
    $region2: #{tpu_custom_call.1} parent=1 // loop_pre_header
      _
    $region3: #{tpu_custom_call.1} parent=1 // loop_header
      %s15 = sphi 0, %s19
      %p16 = scmp.ge.s32.totalorder %s15, 4
      %s22 = sphi 0, %s34
      %s23 = sphi 0, %s30
      %s24 = sphi 0, %s22
      %s25 = sphi 0, %s23
      %s26 = sphi 0, %s24
      %s27 = sphi 0, %s25
      %s39 = sphi 0, %s41
      %s42 = sphi 0, %s39
      %s43 = sphi 0, %s42
      %s59 = sphi 0, %s43
      %s63 = sphi 0, %s63
      %s65 = sphi 0, %s63
      %s66 = sphi 0, %s65
      %s80 = sphi 0, %s66
      %s84 = sphi 0, %s84
      %s86 = sphi 0, %s84
      %s87 = sphi 0, %s86
      %s101 = sphi 0, %s87
      %s109 = sphi 0, %s111
      %s112 = sphi 0, %s109
      %s113 = sphi 0, %s112
      %s129 = sphi 0, %s113
    $region4: #{tpu_custom_call.1} parent=1 // loop_header_branch
      %18 = sbr.rel (%p16) target = $region8
    $region5: #{tpu_custom_call.1} parent=1 // loop_body
      %s20 = ssub.s32 %s15, 1
      %s21 = ssub.s32 %s15, 2
      %s28 = sadd.s32 1, %s23
      %p29 = scmp.ge.s32.totalorder %s28, 1
      %s30 = scalar_select %p29, 0, %s28
      %s31 = sadd.s32 1, %s22
      %s32 = scalar_select %p29, %s31, %s22
      %p33 = scmp.ge.s32.totalorder %s32, 2
      %s34 = scalar_select %p33, 0, %s32
      %s35 = ssub.s32 %s22, %s34
      %s36 = ssub.s32 %s23, %s30
      %s37 = sor.u32 %s35, %s36
      %p38 = scmp.eq.s32.totalorder %s37, 0
      %s40 = sadd.s32 %s39, 1
      %s41 = scalar_select %p38, %s39, %s40
      %p44 = pneg %p38
      %p45 = scmp.eq.s32.totalorder %s15, 1
      %p46 = por %p44, %p45
      %p47 = scmp.ne.s32.totalorder %s39, %s42
      %p48 = scmp.eq.s32.totalorder %s15, 0
      %p49 = por %p47, %p48
      %p50 = scmp.ne.s32.totalorder %s39, %s42
      %p51 = scmp.eq.s32.totalorder %s20, 1
      %p52 = por %p50, %p51
      %p53 = scmp.ne.s32.totalorder %s42, %s43
      %p54 = scmp.eq.s32.totalorder %s20, 0
      %p55 = por %p53, %p54
      %p56 = scmp.ne.s32.totalorder %s42, %s43
      %p57 = scmp.eq.s32.totalorder %s21, 1
      %p58 = por %p56, %p57
      %p60 = scmp.ne.s32.totalorder %s43, %s59
      %p61 = scmp.eq.s32.totalorder %s21, 0
      %p62 = por %p60, %p61
      %s64 = sadd.s32 %s63, 1
      %p67 = scmp.eq.s32.totalorder %s15, 1
      %p68 = scmp.ne.s32.totalorder %s63, %s65
      %p69 = scmp.eq.s32.totalorder %s15, 0
      %p70 = por %p68, %p69
      %p71 = scmp.ne.s32.totalorder %s63, %s65
      %p72 = scmp.eq.s32.totalorder %s20, 1
      %p73 = por %p71, %p72
      %p74 = scmp.ne.s32.totalorder %s65, %s66
      %p75 = scmp.eq.s32.totalorder %s20, 0
      %p76 = por %p74, %p75
      %p77 = scmp.ne.s32.totalorder %s65, %s66
      %p78 = scmp.eq.s32.totalorder %s21, 1
      %p79 = por %p77, %p78
      %p81 = scmp.ne.s32.totalorder %s66, %s80
      %p82 = scmp.eq.s32.totalorder %s21, 0
      %p83 = por %p81, %p82
      %s85 = sadd.s32 %s84, 1
      %p88 = scmp.eq.s32.totalorder %s15, 1
      %p89 = scmp.ne.s32.totalorder %s84, %s86
      %p90 = scmp.eq.s32.totalorder %s15, 0
      %p91 = por %p89, %p90
      %p92 = scmp.ne.s32.totalorder %s84, %s86
      %p93 = scmp.eq.s32.totalorder %s20, 1
      %p94 = por %p92, %p93
      %p95 = scmp.ne.s32.totalorder %s86, %s87
      %p96 = scmp.eq.s32.totalorder %s20, 0
      %p97 = por %p95, %p96
      %p98 = scmp.ne.s32.totalorder %s86, %s87
      %p99 = scmp.eq.s32.totalorder %s21, 1
      %p100 = por %p98, %p99
      %p102 = scmp.ne.s32.totalorder %s87, %s101
      %p103 = scmp.eq.s32.totalorder %s21, 0
      %p104 = por %p102, %p103
      %s105 = ssub.s32 %s22, %s34
      %s106 = ssub.s32 %s23, %s30
      %s107 = sor.u32 %s105, %s106
      %p108 = scmp.eq.s32.totalorder %s107, 0
      %s110 = sadd.s32 %s109, 1
      %s111 = scalar_select %p108, %s109, %s110
      %p114 = pneg %p108
      %p115 = scmp.eq.s32.totalorder %s15, 1
      %p116 = por %p114, %p115
      %p117 = scmp.ne.s32.totalorder %s109, %s112
      %p118 = scmp.eq.s32.totalorder %s15, 0
      %p119 = por %p117, %p118
      %p120 = scmp.ne.s32.totalorder %s109, %s112
      %p121 = scmp.eq.s32.totalorder %s20, 1
      %p122 = por %p120, %p121
      %p123 = scmp.ne.s32.totalorder %s112, %s113
      %p124 = scmp.eq.s32.totalorder %s20, 0
      %p125 = por %p123, %p124
      %p126 = scmp.ne.s32.totalorder %s112, %s113
      %p127 = scmp.eq.s32.totalorder %s21, 1
      %p128 = por %p126, %p127
      %p130 = scmp.ne.s32.totalorder %s113, %s129
      %p131 = scmp.eq.s32.totalorder %s21, 0
      %p132 = por %p130, %p131
      %p133 = scmp.le.s32.totalorder 1, %s15
      %p134 = scmp.lt.s32.totalorder %s15, 3
      %p135 = pnand %p133, %p134
      %p136 = pneg %p135
      // Predicated region
      $region9: #{tpu_custom_call.1} parent=5 // pred_check
        _
      $region10: #{tpu_custom_call.1} parent=5 // pred_check_branch
        %138 = sbr.rel (%p135) target = $region12
      $region11: #{tpu_custom_call.1} parent=5 // pred_region
        %s139 = ssub.s32 %s15, 1
        // Predicated region
        $region13: #{tpu_custom_call.1} parent=11 // pred_check
          %p140 = pneg %p76
        $region14: #{tpu_custom_call.1} parent=11 // pred_check_branch
          %142 = sbr.rel (%p140) target = $region16
        $region15: #{tpu_custom_call.1} parent=11 // pred_region
          _
        $region16: #{tpu_custom_call.1} parent=11 // pred_fallthru
          _
        // Predicated region
        $region17: #{tpu_custom_call.1} parent=11 // pred_check
          %p143 = pneg %p97
        $region18: #{tpu_custom_call.1} parent=11 // pred_check_branch
          %145 = sbr.rel (%p143) target = $region20
        $region19: #{tpu_custom_call.1} parent=11 // pred_region
          _
        $region20: #{tpu_custom_call.1} parent=11 // pred_fallthru
          _
      $region12: #{tpu_custom_call.1} parent=5 // pred_fallthru
        _
      %p146 = scmp.lt.s32.totalorder %s15, 2
      // Predicated region
      $region21: #{tpu_custom_call.1} parent=5 // pred_check
        %p147 = pneg %p146
      $region22: #{tpu_custom_call.1} parent=5 // pred_check_branch
        %149 = sbr.rel (%p147) target = $region24
      $region23: #{tpu_custom_call.1} parent=5 // pred_region
        // Predicated region
        $region25: #{tpu_custom_call.1} parent=23 // pred_check
          %p150 = pneg %p49
        $region26: #{tpu_custom_call.1} parent=23 // pred_check_branch
          %152 = sbr.rel (%p150) target = $region28
        $region27: #{tpu_custom_call.1} parent=23 // pred_region
          %s153 = sand.u32 %s39, 1
          %s154 = scalar_lea.sflag [#allocation3], %s153
          %s155 = sand.u32 %s39, 1
          %s156 = smul.addr %s155, 4
          %s157 = scalar_lea.vmem [#allocation2], %s156
          %s159 = ssub.s32 64, 64
          %160 = vsyncadd %s154, %s159
          %s161 = sadd.s32 %s23, %s22
          %s162 = smul.addr %s161, 64
          %s163 = scalar_lea.hbm %s0, %s162
          %s165 = sshll.u32 %s157, 4
          %s166 = int_to_ptr.vmem [resolvable:$true] %s165
          %168 = dma.hbm_to_vmem [thread:$0]  %s163, 64, %s166, %s154
        $region28: #{tpu_custom_call.1} parent=23 // pred_fallthru
          _
      $region24: #{tpu_custom_call.1} parent=5 // pred_fallthru
        _
      %p169 = scmp.le.s32.totalorder 1, %s15
      %p170 = scmp.lt.s32.totalorder %s15, 3
      %p171 = pnand %p169, %p170
      %p172 = pneg %p171
      // Predicated region
      $region29: #{tpu_custom_call.1} parent=5 // pred_check
        _
      $region30: #{tpu_custom_call.1} parent=5 // pred_check_branch
        %174 = sbr.rel (%p171) target = $region32
      $region31: #{tpu_custom_call.1} parent=5 // pred_region
        %s175 = ssub.s32 %s15, 1
        %s176 = sand.u32 %s42, 1
        %s177 = scalar_lea.sflag [#allocation3], %s176
        %s178 = sand.u32 %s42, 1
        %s179 = smul.addr %s178, 4
        %s180 = scalar_lea.vmem [#allocation2], %s179
        // Predicated region
        $region33: #{tpu_custom_call.1} parent=31 // pred_check
          %p181 = pneg %p55
        $region34: #{tpu_custom_call.1} parent=31 // pred_check_branch
          %183 = sbr.rel (%p181) target = $region36
        $region35: #{tpu_custom_call.1} parent=31 // pred_region
          %184 = dma.done %s177, 64
        $region36: #{tpu_custom_call.1} parent=31 // pred_fallthru
          _
        %s185 = sand.u32 %s42, 1
        %s186 = scalar_lea.sflag [#allocation3], %s185
        %s187 = sand.u32 %s42, 1
        %s188 = smul.addr %s187, 4
        %s189 = scalar_lea.vmem [#allocation2], %s188
        %p190 = pneg %p55
        %p191 = pneg %p52
        %p192 = pneg %p76
        %p193 = pneg %p73
        %p194 = pneg %p97
        %p195 = pneg %p94
        %p196 = pneg %p125
        %p197 = pneg %p122
        %s198 = sand.u32 %s112, 1
        %s199 = scalar_lea.sflag [#allocation4], %s198
        %s200 = sand.u32 %s112, 1
        %s201 = smul.addr %s200, 4
        %s202 = scalar_lea.vmem [#allocation5], %s201
        %v204 = vld [vmem:[%s180] sm:$0xf]
        %v205 = vld [vmem:[%s1] sm:$0x3]
        %v206 = vld [vmem:[%s2] sm:$0xf]
        %208 = vset.pattern.permute.xlu0 0
        %209 = vperm.xlu0 %208, %v206
        %v210 = vpop.permute.xlu0 %209
        %vm212 = vcmask 64512
        %v214 = vsel %vm212, %v205, 0
        %vm216 = vcmask 1043456
        %v218 = vsel %vm216, %v204, 0
        %220 = vmatprep.subr.bf16.mxu0 0
        %221 = vmatpush1.bf16.msra.mxu0 %v218
        %222 = vmatprep.subr.bf16.mxu0 0
        %223 = vmatpush1.bf16.msra.mxu0 0
        %224 = vmatprep.subr.bf16.mxu0 0
        %225 = vmatpush1.bf16.msra.mxu0 0
        %226 = vmatprep.subr.bf16.mxu0 0
        %227 = vmatpush1.bf16.msra.mxu0 0
        %228 = vmatprep.subr.bf16.mxu0 0
        %229 = vmatpush1.bf16.msra.mxu0 0
        %230 = vmatprep.subr.bf16.mxu0 0
        %231 = vmatpush1.bf16.msra.mxu0 0
        %232 = vmatprep.subr.bf16.mxu0 0
        %233 = vmatpush1.bf16.msra.mxu0 0
        %234 = vmatprep.subr.bf16.mxu0 0
        %235 = vmatpush1.bf16.msra.mxu0 0
        %236 = vmatprep.subr.bf16.mxu0 0
        %237 = vmatpush1.bf16.msra.mxu0 0
        %238 = vmatprep.subr.bf16.mxu0 0
        %239 = vmatpush1.bf16.msra.mxu0 0
        %240 = vmatprep.subr.bf16.mxu0 0
        %241 = vmatpush1.bf16.msra.mxu0 0
        %242 = vmatprep.subr.bf16.mxu0 0
        %243 = vmatpush1.bf16.msra.mxu0 0
        %244 = vmatprep.subr.bf16.mxu0 0
        %245 = vmatpush1.bf16.msra.mxu0 0
        %246 = vmatprep.subr.bf16.mxu0 0
        %247 = vmatpush1.bf16.msra.mxu0 0
        %248 = vmatprep.subr.bf16.mxu0 0
        %249 = vmatpush1.bf16.msra.mxu0 0
        %250 = vmatprep.subr.bf16.mxu0 0
        %251 = vmatpush1.bf16.msra.mxu0 0
        %252 = vmatprep.mubr.bf16.mxu0 0
        %253 = vmatmul.mubr.bf16.gmra.mrb[0].mxu0 %v214
        %v254 = vpop.f32.mrb[0].mxu0
        %v255 = vadd.f32 %v210, %v254
        %v256 = vpop.f32.mrb[0].mxu0
        %v257 = vpop.f32.mrb[0].mxu0
        %v258 = vpop.f32.mrb[0].mxu0
        %259 = vdwg.mxu0
        %260 = vst [vmem:[%s202] sm:$0xf] %v255
        %s261 = sand.u32 %s112, 1
        %s262 = scalar_lea.sflag [#allocation4], %s261
        %s263 = sand.u32 %s112, 1
        %s264 = smul.addr %s263, 4
        %s265 = scalar_lea.vmem [#allocation5], %s264
        // Predicated region
        $region37: #{tpu_custom_call.1} parent=31 // pred_check
          %p266 = pneg %p122
        $region38: #{tpu_custom_call.1} parent=31 // pred_check_branch
          %268 = sbr.rel (%p266) target = $region40
        $region39: #{tpu_custom_call.1} parent=31 // pred_region
          %s270 = ssub.s32 64, 64
          %271 = vsyncadd %s262, %s270
          %s272 = sadd.s32 %s25, %s24
          %s273 = smul.addr %s272, 64
          %s274 = scalar_lea.hbm %s3, %s273
          %s276 = sshll.u32 %s265, 4
          %s277 = int_to_ptr.vmem [resolvable:$true] %s276
          %279 = dma.vmem_to_hbm [thread:$0]  %s277, 64, %s274, %s262
        $region40: #{tpu_custom_call.1} parent=31 // pred_fallthru
          _
      $region32: #{tpu_custom_call.1} parent=5 // pred_fallthru
        _
      %p280 = scmp.le.s32.totalorder 2, %s15
      // Predicated region
      $region41: #{tpu_custom_call.1} parent=5 // pred_check
        %p281 = pneg %p280
      $region42: #{tpu_custom_call.1} parent=5 // pred_check_branch
        %283 = sbr.rel (%p281) target = $region44
      $region43: #{tpu_custom_call.1} parent=5 // pred_region
        %s284 = ssub.s32 %s15, 2
        // Predicated region
        $region45: #{tpu_custom_call.1} parent=43 // pred_check
          %p285 = pneg %p128
        $region46: #{tpu_custom_call.1} parent=43 // pred_check_branch
          %287 = sbr.rel (%p285) target = $region48
        $region47: #{tpu_custom_call.1} parent=43 // pred_region
          %s288 = sand.u32 %s113, 1
          %s289 = scalar_lea.sflag [#allocation4], %s288
          %s290 = sand.u32 %s113, 1
          %s291 = smul.addr %s290, 4
          %s292 = scalar_lea.vmem [#allocation5], %s291
          %293 = dma.done %s289, 64
        $region48: #{tpu_custom_call.1} parent=43 // pred_fallthru
          _
      $region44: #{tpu_custom_call.1} parent=5 // pred_fallthru
        _
    $region6: #{tpu_custom_call.1} parent=1 // loop_footer
      %s19 = sadd.s32 1, %s15
    $region7: #{tpu_custom_call.1} parent=1 // loop_footer_branch
      %14 = sbr.rel target = $region3
    $region8: #{tpu_custom_call.1} parent=1 // loop_exit
      _
    %294 = vsyncpa [#allocation3], 1
    %s295 = scalar_lea.sflag [#allocation3], 1
    %296 = vsyncpa %s295, 1
    %297 = vsyncpa [#allocation4], 1
    %s298 = scalar_lea.sflag [#allocation4], 1
    %299 = vsyncpa %s298, 1

</llo_original>
